<compile_context>
chip_gen: v5e
topology: v5e:2x2
jax: 0.10.0
libtpu: 0.0.40
codegen_flags: <defaults>
</compile_context>

<pallas_src>
import numpy as np
import jax
import jax.numpy as jnp
from jax.experimental import pallas as pl
from jax.experimental.pallas import tpu as pltpu


# ----------------------------------------------------------------------------
# Irreps bookkeeping (host-side glue).  An irreps list is [(mul, l, p), ...]
# with p in {+1, -1}; e.g. "8x0e + 4x1o + 2x2e" -> [(8,0,1), (4,1,-1), (2,2,1)].
# ----------------------------------------------------------------------------
def irreps_dim(irreps):
    return sum(mul * (2 * l + 1) for mul, l, p in irreps)


def _check_sorted(irreps):
    # mirrors ConcatIrrepsTensor.check_sorted: l non-decreasing, parity
    # strictly increasing within equal l, each (l, p) appearing once.
    lmax, p = None, None
    seen = set()
    for mul, l, par in irreps:
        assert (l, par) not in seen, "irreps must be simplified"
        seen.add((l, par))
        if lmax is None:
            lmax, p = l, par
            continue
        if l == lmax:
            assert p < par, "Parity order error"
        assert lmax <= l
        lmax, p = l, par


def _ir_index(l, p, irreps):
    for i, (mul, ll, pp) in enumerate(irreps):
        if (ll, pp) == (l, p):
            return i
    return -1


def make_ir_mul_list(irreps_1, irreps_2):
    """Mirror ConcatIrrepsTensor.__init__: list of (start_1, dim_1, start_2, dim_2)."""
    _check_sorted(irreps_1)
    _check_sorted(irreps_2)
    dims_1 = [mul * (2 * l + 1) for mul, l, p in irreps_1]
    dims_2 = [mul * (2 * l + 1) for mul, l, p in irreps_2]
    lmax = max(max(l for _, l, _ in irreps_1), max(l for _, l, _ in irreps_2))

    ir_mul_list = []
    s1 = s2 = 0
    for l in range(lmax + 1):
        for p in (-1, 1):  # irreps_max order: (l, odd) then (l, even)
            i1 = _ir_index(l, p, irreps_1)
            i2 = _ir_index(l, p, irreps_2)
            d1 = dims_1[i1] if i1 != -1 else None
            d2 = dims_2[i2] if i2 != -1 else None
            ir_mul_list.append((s1, d1, s2, d2))
            s1 = s1 + d1 if d1 is not None else s1
            s2 = s2 + d2 if d2 is not None else s2
    return ir_mul_list


def plan_segments(ir_mul_list):
    """Output-ordered list of (src, src_start, width); src 0 = feature_1, 1 = feature_2."""
    segments = []
    for s1, d1, s2, d2 in ir_mul_list:
        if d1 is not None:
            segments.append((0, s1, d1))
        if d2 is not None:
            segments.append((1, s2, d2))
    return segments


def coalesce_segments(segments):
    """Merge adjacent output segments that are contiguous in the same source."""
    merged = []
    for src, start, width in segments:
        if merged and merged[-1][0] == src and merged[-1][1] + merged[-1][2] == start:
            psrc, pstart, pwidth = merged[-1]
            merged[-1] = (psrc, pstart, pwidth + width)
        else:
            merged.append((src, start, width))
    return merged


# ----------------------------------------------------------------------------
# Pallas kernel: one row tile per grid step; static-slice interleave, single
# lane-dense store per tile.
# ----------------------------------------------------------------------------
def _make_concat_kernel(segments):
    def kernel(f1_ref, f2_ref, o_ref):
        f1 = f1_ref[...]
        f2 = f2_ref[...]
        parts = [(f1 if src == 0 else f2)[:, start:start + width]
                 for src, start, width in segments]
        o_ref[...] = parts[0] if len(parts) == 1 else jnp.concatenate(parts, axis=-1)
    return kernel


def _sublane_pack(dtype):
    return {4: 8, 2: 16, 1: 32}.get(jnp.dtype(dtype).itemsize, 8)


def _xla_forward(feature_1, feature_2, segments):
    parts = [(feature_1 if src == 0 else feature_2)[..., start:start + width]
             for src, start, width in segments]
    return parts[0] if len(parts) == 1 else jnp.concatenate(parts, axis=-1)


def concat_irreps_tensor(feature_1, feature_2, irreps_1, irreps_2, *,
                         row_tile=1024, small_n_fallback=128):
    """Pallas-backed ConcatIrrepsTensor.forward."""
    ir_mul_list = make_ir_mul_list(irreps_1, irreps_2)
    segments = coalesce_segments(plan_segments(ir_mul_list))
    D1, D2 = irreps_dim(irreps_1), irreps_dim(irreps_2)
    Dout = D1 + D2
    assert feature_1.shape[-1] == D1 and feature_2.shape[-1] == D2
    assert feature_1.shape[:-1] == feature_2.shape[:-1], (
        "feature_1 / feature_2 leading shapes must match")

    dtype = jnp.promote_types(feature_1.dtype, feature_2.dtype)
    feature_1 = feature_1.astype(dtype)
    feature_2 = feature_2.astype(dtype)

    lead_shape = feature_1.shape[:-1]
    N = int(np.prod(lead_shape)) if lead_shape else 1

    # Small problems: pallas_call fixed cost + per-grid-step overhead dominates.
    if N < small_n_fallback:
        return _xla_forward(feature_1, feature_2, segments)

    f1 = feature_1.reshape(N, D1)
    f2 = feature_2.reshape(N, D2)

    itemsize = jnp.dtype(dtype).itemsize
    sub = _sublane_pack(dtype)

    # Row tile: bounded by a VMEM budget (double-buffered in/out tiles),
    # rounded to the dtype sublane pack, >= 2 grid steps when possible (v7x).
    vmem_budget = 24 << 20
    bytes_per_row = 2 * (D1 + D2 + Dout) * itemsize     # double-buffered I/O
    tn_cap = max(sub, (vmem_budget // max(1, bytes_per_row)) // sub * sub)
    tn = max(sub, min(row_tile, tn_cap) // sub * sub)
    if N >= 2 * sub:
        half = -(-((N + 1) // 2) // sub) * sub           # ceil(N/2) -> sublane multiple
        tn = min(tn, half)
    tn = min(tn, -(-N // sub) * sub)                     # never wider than padded N

    grid = (pl.cdiv(N, tn),)
    vmem_bytes = 2 * tn * (D1 + D2 + Dout) * itemsize
    vmem_limit = int(min(64 << 20, max(4 << 20, 2 * vmem_bytes)))

    out = pl.pallas_call(
        _make_concat_kernel(segments),
        out_shape=jax.ShapeDtypeStruct((N, Dout), dtype),
        grid=grid,
        in_specs=[
            pl.BlockSpec((tn, D1), lambda i: (i, 0)),    # feature_1 row tile
            pl.BlockSpec((tn, D2), lambda i: (i, 0)),    # feature_2 row tile
        ],
        out_specs=pl.BlockSpec((tn, Dout), lambda i: (i, 0)),
        compiler_params=pltpu.CompilerParams(
            dimension_semantics=("parallel",),
            vmem_limit_bytes=vmem_limit),
        cost_estimate=pl.CostEstimate(
            flops=0, transcendentals=0,
            bytes_accessed=int(N * (D1 + D2 + Dout) * itemsize)),
    )(f1, f2)

    return out.reshape(lead_shape + (Dout,))


# ----------------------------------------------------------------------------
# Pure-JAX reference mirroring the PyTorch forward (narrow + cat).
# ----------------------------------------------------------------------------
def reference_forward(feature_1, feature_2, ir_mul_list):
    output = []
    for start_1, d1, start_2, d2 in ir_mul_list:
        if d1 is not None:
            output.append(feature_1[..., start_1:start_1 + d1])
        if d2 is not None:
            output.append(feature_2[..., start_2:start_2 + d2])
    return jnp.concatenate(output, axis=-1)


# ----------------------------------------------------------------------------
if __name__ == "__main__":
    # irreps_1 = "8x0e + 4x1o + 2x2e"         -> D1 = 8 + 12 + 10 = 30
    # irreps_2 = "6x0e + 3x1o + 2x1e + 1x2o"  -> D2 = 6 + 9 + 6 + 5 = 26
    irreps_1 = [(8, 0, 1), (4, 1, -1), (2, 2, 1)]
    irreps_2 = [(6, 0, 1), (3, 1, -1), (2, 1, 1), (1, 2, -1)]
    D1, D2 = irreps_dim(irreps_1), irreps_dim(irreps_2)

    N = 1024  # rows (e.g. graph nodes) -- large enough to exercise the Pallas path
    key = jax.random.PRNGKey(0)
    k1, k2 = jax.random.split(key)
    feature_1 = jax.random.normal(k1, (N, D1), dtype=jnp.float32)
    feature_2 = jax.random.normal(k2, (N, D2), dtype=jnp.float32)

    out = concat_irreps_tensor(feature_1, feature_2, irreps_1, irreps_2)
    out = jax.block_until_ready(out)

    ir_mul_list = make_ir_mul_list(irreps_1, irreps_2)
    ref = reference_forward(feature_1, feature_2, ir_mul_list)
    np.testing.assert_array_equal(np.asarray(out), np.asarray(ref))
    print("KERNEL_OK")
</pallas_src>

<mosaic_0001>
module attributes {stable_mosaic.version = 11 : i64} {
  func.func @kernel(%arg0: i32, %arg1: memref<512x30xf32, #tpu.memory_space<vmem>>, %arg2: memref<512x26xf32, #tpu.memory_space<vmem>>, %arg3: memref<512x56xf32, #tpu.memory_space<vmem>>) attributes {dimension_semantics = [#tpu.dimension_semantics<parallel>], iteration_bounds = array<i64: 2>, scalar_prefetch = 0 : i64, scratch_operands = 0 : i64, tpu.core_type = #tpu.core_type<tc>, window_params = [{transform_indices = @transform_0, window_bounds = array<i64: 512, 30>}, {transform_indices = @transform_1, window_bounds = array<i64: 512, 26>}, {transform_indices = @transform_2, window_bounds = array<i64: 512, 56>}]} {
    %c0 = arith.constant 0 : index
    %c0_0 = arith.constant 0 : index
    %0 = vector.load %arg1[%c0, %c0_0] : memref<512x30xf32, #tpu.memory_space<vmem>>, vector<512x30xf32>
    %c0_1 = arith.constant 0 : index
    %c0_2 = arith.constant 0 : index
    %1 = vector.load %arg2[%c0_1, %c0_2] : memref<512x26xf32, #tpu.memory_space<vmem>>, vector<512x26xf32>
    %2 = vector.extract_strided_slice %0 {offsets = [0, 0], sizes = [512, 8], strides = [1, 1]} : vector<512x30xf32> to vector<512x8xf32>
    %3 = vector.extract_strided_slice %1 {offsets = [0, 0], sizes = [512, 6], strides = [1, 1]} : vector<512x26xf32> to vector<512x6xf32>
    %4 = vector.extract_strided_slice %0 {offsets = [0, 8], sizes = [512, 12], strides = [1, 1]} : vector<512x30xf32> to vector<512x12xf32>
    %5 = vector.extract_strided_slice %1 {offsets = [0, 6], sizes = [512, 20], strides = [1, 1]} : vector<512x26xf32> to vector<512x20xf32>
    %6 = vector.extract_strided_slice %0 {offsets = [0, 20], sizes = [512, 10], strides = [1, 1]} : vector<512x30xf32> to vector<512x10xf32>
    %7 = tpu.concatenate %2, %3, %4, %5, %6 in 1 : vector<512x8xf32>, vector<512x6xf32>, vector<512x12xf32>, vector<512x20xf32>, vector<512x10xf32> -> vector<512x56xf32>
    %c0_3 = arith.constant 0 : index
    %c0_4 = arith.constant 0 : index
    %8 = vector.load %arg3[%c0_3, %c0_4] : memref<512x56xf32, #tpu.memory_space<vmem>>, vector<512x56xf32>
    tpu.vector_store %arg3[%c0_3, %c0_4], %7 {strides = array<i32>} : memref<512x56xf32, #tpu.memory_space<vmem>>, vector<512x56xf32>,
    return
  }
  func.func @transform_0(%arg0: i32) -> (i32, i32) {
    %c0_i32 = arith.constant 0 : i32
    %c0_i32_0 = arith.constant 0 : i32
    return %arg0, %c0_i32 : i32, i32
  }
  func.func @transform_1(%arg0: i32) -> (i32, i32) {
    %c0_i32 = arith.constant 0 : i32
    %c0_i32_0 = arith.constant 0 : i32
    return %arg0, %c0_i32 : i32, i32
  }
  func.func @transform_2(%arg0: i32) -> (i32, i32) {
    %c0_i32 = arith.constant 0 : i32
    %c0_i32_0 = arith.constant 0 : i32
    return %arg0, %c0_i32 : i32, i32
  }
}

</mosaic_0001>

<llo_original>
// kernel: tpu_custom_call.1
$region0: #{tpu_custom_call.1}
  #allocation0 [shape = 'u32[]', space=smem, size = 0x4, offset = 0x4, fixed_abs, tag = 'smem constant byte address 0x4 - core index']
  #allocation1 [shape = 'u32[72,128]{1,0:T(1,128)}', space=vmem, size = 0x9000, scoped, tag = 'internal scratch']
  %s0 = inlined_call_operand.vmem [shape: f32[1024,30], index: 0, kind: input, shape index: {}]
  %s1 = inlined_call_operand.vmem [shape: f32[1024,26], index: 1, kind: input, shape index: {}]
  %s2 = inlined_call_operand.vmem [shape: f32[1024,56], index: 2, kind: output, shape index: {}]
  %s3 = sld [smem:[#allocation0]]
  $region41: #{tpu_custom_call.1} parent=0
    _
  %s5 = ssub.s32 1, %s3
  %s6 = scalar_select 0, %s5, %s3
  loop: start=0, step=1, limit=4
  $region2: #{tpu_custom_call.1} parent=0 // loop_pre_header
    _
  $region3: #{tpu_custom_call.1} parent=0 // loop_header
    %s8 = sphi 0, %s12
    %p9 = scmp.ge.s32.totalorder %s8, 4
    %s18 = sphi 0, %s20
    %s21 = sphi 0, %s18
    %s22 = sphi 0, %s21
    %s38 = sphi 0, %s22
    %s44 = sphi 0, %s46
    %s47 = sphi 0, %s44
    %s48 = sphi 0, %s47
    %s64 = sphi 0, %s48
    %s70 = sphi 0, %s72
    %s73 = sphi 0, %s70
    %s74 = sphi 0, %s73
    %s90 = sphi 0, %s74
  $region4: #{tpu_custom_call.1} parent=0 // loop_header_branch
    %11 = sbr.rel (%p9) target = $region8
  $region5: #{tpu_custom_call.1} parent=0 // loop_body
    %s13 = ssub.s32 %s8, 1
    %s14 = ssub.s32 %s8, 2
    %s15 = sadd.s32 %s8, 1
    %s16 = ssub.s32 %s8, %s15
    %p17 = scmp.eq.s32.totalorder %s16, 0
    %s19 = sadd.s32 %s18, 1
    %s20 = scalar_select %p17, %s18, %s19
    %p23 = pneg %p17
    %p24 = scmp.eq.s32.totalorder %s8, 1
    %p25 = por %p23, %p24
    %p26 = scmp.ne.s32.totalorder %s18, %s21
    %p27 = scmp.eq.s32.totalorder %s8, 0
    %p28 = por %p26, %p27
    %p29 = scmp.ne.s32.totalorder %s18, %s21
    %p30 = scmp.eq.s32.totalorder %s13, 1
    %p31 = por %p29, %p30
    %p32 = scmp.ne.s32.totalorder %s21, %s22
    %p33 = scmp.eq.s32.totalorder %s13, 0
    %p34 = por %p32, %p33
    %p35 = scmp.ne.s32.totalorder %s21, %s22
    %p36 = scmp.eq.s32.totalorder %s14, 1
    %p37 = por %p35, %p36
    %p39 = scmp.ne.s32.totalorder %s22, %s38
    %p40 = scmp.eq.s32.totalorder %s14, 0
    %p41 = por %p39, %p40
    %s42 = ssub.s32 %s8, %s15
    %p43 = scmp.eq.s32.totalorder %s42, 0
    %s45 = sadd.s32 %s44, 1
    %s46 = scalar_select %p43, %s44, %s45
    %p49 = pneg %p43
    %p50 = scmp.eq.s32.totalorder %s8, 1
    %p51 = por %p49, %p50
    %p52 = scmp.ne.s32.totalorder %s44, %s47
    %p53 = scmp.eq.s32.totalorder %s8, 0
    %p54 = por %p52, %p53
    %p55 = scmp.ne.s32.totalorder %s44, %s47
    %p56 = scmp.eq.s32.totalorder %s13, 1
    %p57 = por %p55, %p56
    %p58 = scmp.ne.s32.totalorder %s47, %s48
    %p59 = scmp.eq.s32.totalorder %s13, 0
    %p60 = por %p58, %p59
    %p61 = scmp.ne.s32.totalorder %s47, %s48
    %p62 = scmp.eq.s32.totalorder %s14, 1
    %p63 = por %p61, %p62
    %p65 = scmp.ne.s32.totalorder %s48, %s64
    %p66 = scmp.eq.s32.totalorder %s14, 0
    %p67 = por %p65, %p66
    %s68 = ssub.s32 %s8, %s15
    %p69 = scmp.eq.s32.totalorder %s68, 0
    %s71 = sadd.s32 %s70, 1
    %s72 = scalar_select %p69, %s70, %s71
    %p75 = pneg %p69
    %p76 = scmp.eq.s32.totalorder %s8, 1
    %p77 = por %p75, %p76
    %p78 = scmp.ne.s32.totalorder %s70, %s73
    %p79 = scmp.eq.s32.totalorder %s8, 0
    %p80 = por %p78, %p79
    %p81 = scmp.ne.s32.totalorder %s70, %s73
    %p82 = scmp.eq.s32.totalorder %s13, 1
    %p83 = por %p81, %p82
    %p84 = scmp.ne.s32.totalorder %s73, %s74
    %p85 = scmp.eq.s32.totalorder %s13, 0
    %p86 = por %p84, %p85
    %p87 = scmp.ne.s32.totalorder %s73, %s74
    %p88 = scmp.eq.s32.totalorder %s14, 1
    %p89 = por %p87, %p88
    %p91 = scmp.ne.s32.totalorder %s74, %s90
    %p92 = scmp.eq.s32.totalorder %s14, 0
    %p93 = por %p91, %p92
    %p94 = scmp.le.s32.totalorder 1, %s8
    %p95 = scmp.lt.s32.totalorder %s8, 3
    %p96 = pnand %p94, %p95
    %p97 = pneg %p96
    // Predicated region
    $region9: #{tpu_custom_call.1} parent=5 // pred_check
      _
    $region10: #{tpu_custom_call.1} parent=5 // pred_check_branch
      %99 = sbr.rel (%p96) target = $region12
    $region11: #{tpu_custom_call.1} parent=5 // pred_region
      %s100 = ssub.s32 %s8, 1
    $region12: #{tpu_custom_call.1} parent=5 // pred_fallthru
      _
    %p101 = scmp.lt.s32.totalorder %s8, 2
    // Predicated region
    $region13: #{tpu_custom_call.1} parent=5 // pred_check
      %p102 = pneg %p101
    $region14: #{tpu_custom_call.1} parent=5 // pred_check_branch
      %104 = sbr.rel (%p102) target = $region16
    $region15: #{tpu_custom_call.1} parent=5 // pred_region
      // Predicated region
      $region17: #{tpu_custom_call.1} parent=15 // pred_check
        %p105 = pneg %p28
      $region18: #{tpu_custom_call.1} parent=15 // pred_check_branch
        %107 = sbr.rel (%p105) target = $region20
      $region19: #{tpu_custom_call.1} parent=15 // pred_region
        %s108 = smul.u32 64, %s8
        %p109 = scmp.lt.s32.totalorder %s108, 127
        %s110 = scalar_select %p109, %s108, 127
        %s111 = smul.addr %s110, 8
        %s112 = scalar_lea.vmem %s0, %s111
        %s113 = smul.u32 64, %s8
      $region20: #{tpu_custom_call.1} parent=15 // pred_fallthru
        _
      // Predicated region
      $region21: #{tpu_custom_call.1} parent=15 // pred_check
        %p114 = pneg %p54
      $region22: #{tpu_custom_call.1} parent=15 // pred_check_branch
        %116 = sbr.rel (%p114) target = $region24
      $region23: #{tpu_custom_call.1} parent=15 // pred_region
        %s117 = smul.u32 64, %s8
        %p118 = scmp.lt.s32.totalorder %s117, 127
        %s119 = scalar_select %p118, %s117, 127
        %s120 = smul.addr %s119, 8
        %s121 = scalar_lea.vmem %s1, %s120
        %s122 = smul.u32 64, %s8
      $region24: #{tpu_custom_call.1} parent=15 // pred_fallthru
        _
    $region16: #{tpu_custom_call.1} parent=5 // pred_fallthru
      _
    %p123 = scmp.le.s32.totalorder 1, %s8
    %p124 = scmp.lt.s32.totalorder %s8, 3
    %p125 = pnand %p123, %p124
    %p126 = pneg %p125
    // Predicated region
    $region25: #{tpu_custom_call.1} parent=5 // pred_check
      _
    $region26: #{tpu_custom_call.1} parent=5 // pred_check_branch
      %128 = sbr.rel (%p125) target = $region28
    $region27: #{tpu_custom_call.1} parent=5 // pred_region
      %s129 = ssub.s32 %s8, 1
      %s130 = smul.u32 64, %s13
      %p131 = scmp.lt.s32.totalorder %s130, 127
      %s132 = scalar_select %p131, %s130, 127
      %s133 = smul.addr %s132, 8
      %s134 = scalar_lea.vmem %s0, %s133
      %p135 = pneg %p34
      %p136 = pneg %p31
      %s137 = smul.u32 64, %s13
      %p138 = scmp.lt.s32.totalorder %s137, 127
      %s139 = scalar_select %p138, %s137, 127
      %s140 = smul.addr %s139, 8
      %s141 = scalar_lea.vmem %s1, %s140
      %p142 = pneg %p60
      %p143 = pneg %p57
      %p144 = pneg %p86
      %p145 = pneg %p83
      %s146 = smul.u32 64, %s13
      %p147 = scmp.lt.s32.totalorder %s146, 127
      %s148 = scalar_select %p147, %s146, 127
      %s149 = smul.addr %s148, 8
      %s150 = scalar_lea.vmem %s2, %s149
      %s151 = smul.u32 64, %s13
      %p152 = scmp.lt.s32.totalorder %s151, 127
      %s153 = scalar_select %p152, %s151, 127
      %s154 = smul.addr %s153, 8
      %s155 = scalar_lea.vmem %s0, %s154
      %s156 = smul.u32 64, %s13
      %s157 = smul.u32 64, %s13
      %p158 = scmp.lt.s32.totalorder %s157, 127
      %s159 = scalar_select %p158, %s157, 127
      %s160 = smul.addr %s159, 8
      %s161 = scalar_lea.vmem %s1, %s160
      %s162 = smul.u32 64, %s13
      %s163 = smul.u32 64, %s13
      %p164 = scmp.lt.s32.totalorder %s163, 127
      %s165 = scalar_select %p164, %s163, 127
      %s166 = smul.addr %s165, 8
      %s167 = scalar_lea.vmem %s2, %s166
      %s168 = smul.u32 64, %s13
      %v169 = vld [vmem:[%s155] sm:$0xff]
      %v170 = vld [vmem:[%s155 + $0x8] sm:$0xff]
      %v171 = vld [vmem:[%s155 + $0x10] sm:$0xff]
      %v172 = vld [vmem:[%s155 + $0x18] sm:$0xff]
      %v173 = vld [vmem:[%s155 + $0x20] sm:$0xff]
      %v174 = vld [vmem:[%s155 + $0x28] sm:$0xff]
      %v175 = vld [vmem:[%s155 + $0x30] sm:$0xff]
      %v176 = vld [vmem:[%s155 + $0x38] sm:$0xff]
      %v177 = vld [vmem:[%s155 + $0x40] sm:$0xff]
      %v178 = vld [vmem:[%s155 + $0x48] sm:$0xff]
      %v179 = vld [vmem:[%s155 + $0x50] sm:$0xff]
      %v180 = vld [vmem:[%s155 + $0x58] sm:$0xff]
      %v181 = vld [vmem:[%s155 + $0x60] sm:$0xff]
      %v182 = vld [vmem:[%s155 + $0x68] sm:$0xff]
      %v183 = vld [vmem:[%s155 + $0x70] sm:$0xff]
      %v184 = vld [vmem:[%s155 + $0x78] sm:$0xff]
      %v185 = vld [vmem:[%s155 + $0x80] sm:$0xff]
      %v186 = vld [vmem:[%s155 + $0x88] sm:$0xff]
      %v187 = vld [vmem:[%s155 + $0x90] sm:$0xff]
      %v188 = vld [vmem:[%s155 + $0x98] sm:$0xff]
      %v189 = vld [vmem:[%s155 + $0xa0] sm:$0xff]
      %v190 = vld [vmem:[%s155 + $0xa8] sm:$0xff]
      %v191 = vld [vmem:[%s155 + $0xb0] sm:$0xff]
      %v192 = vld [vmem:[%s155 + $0xb8] sm:$0xff]
      %v193 = vld [vmem:[%s155 + $0xc0] sm:$0xff]
      %v194 = vld [vmem:[%s155 + $0xc8] sm:$0xff]
      %v195 = vld [vmem:[%s155 + $0xd0] sm:$0xff]
      %v196 = vld [vmem:[%s155 + $0xd8] sm:$0xff]
      %v197 = vld [vmem:[%s155 + $0xe0] sm:$0xff]
      %v198 = vld [vmem:[%s155 + $0xe8] sm:$0xff]
      %v199 = vld [vmem:[%s155 + $0xf0] sm:$0xff]
      %v200 = vld [vmem:[%s155 + $0xf8] sm:$0xff]
      %v201 = vld [vmem:[%s155 + $0x100] sm:$0xff]
      %v202 = vld [vmem:[%s155 + $0x108] sm:$0xff]
      %v203 = vld [vmem:[%s155 + $0x110] sm:$0xff]
      %v204 = vld [vmem:[%s155 + $0x118] sm:$0xff]
      %v205 = vld [vmem:[%s155 + $0x120] sm:$0xff]
      %v206 = vld [vmem:[%s155 + $0x128] sm:$0xff]
      %v207 = vld [vmem:[%s155 + $0x130] sm:$0xff]
      %v208 = vld [vmem:[%s155 + $0x138] sm:$0xff]
      %v209 = vld [vmem:[%s155 + $0x140] sm:$0xff]
      %v210 = vld [vmem:[%s155 + $0x148] sm:$0xff]
      %v211 = vld [vmem:[%s155 + $0x150] sm:$0xff]
      %v212 = vld [vmem:[%s155 + $0x158] sm:$0xff]
      %v213 = vld [vmem:[%s155 + $0x160] sm:$0xff]
      %v214 = vld [vmem:[%s155 + $0x168] sm:$0xff]
      %v215 = vld [vmem:[%s155 + $0x170] sm:$0xff]
      %v216 = vld [vmem:[%s155 + $0x178] sm:$0xff]
      %v217 = vld [vmem:[%s155 + $0x180] sm:$0xff]
      %v218 = vld [vmem:[%s155 + $0x188] sm:$0xff]
      %v219 = vld [vmem:[%s155 + $0x190] sm:$0xff]
      %v220 = vld [vmem:[%s155 + $0x198] sm:$0xff]
      %v221 = vld [vmem:[%s155 + $0x1a0] sm:$0xff]
      %v222 = vld [vmem:[%s155 + $0x1a8] sm:$0xff]
      %v223 = vld [vmem:[%s155 + $0x1b0] sm:$0xff]
      %v224 = vld [vmem:[%s155 + $0x1b8] sm:$0xff]
      %v225 = vld [vmem:[%s155 + $0x1c0] sm:$0xff]
      %v226 = vld [vmem:[%s155 + $0x1c8] sm:$0xff]
      %v227 = vld [vmem:[%s155 + $0x1d0] sm:$0xff]
      %v228 = vld [vmem:[%s155 + $0x1d8] sm:$0xff]
      %v229 = vld [vmem:[%s155 + $0x1e0] sm:$0xff]
      %v230 = vld [vmem:[%s155 + $0x1e8] sm:$0xff]
      %v231 = vld [vmem:[%s155 + $0x1f0] sm:$0xff]
      %v232 = vld [vmem:[%s155 + $0x1f8] sm:$0xff]
      %v233 = vld [vmem:[%s161] sm:$0xff]
      %v234 = vld [vmem:[%s161 + $0x8] sm:$0xff]
      %v235 = vld [vmem:[%s161 + $0x10] sm:$0xff]
      %v236 = vld [vmem:[%s161 + $0x18] sm:$0xff]
      %v237 = vld [vmem:[%s161 + $0x20] sm:$0xff]
      %v238 = vld [vmem:[%s161 + $0x28] sm:$0xff]
      %v239 = vld [vmem:[%s161 + $0x30] sm:$0xff]
      %v240 = vld [vmem:[%s161 + $0x38] sm:$0xff]
      %v241 = vld [vmem:[%s161 + $0x40] sm:$0xff]
      %v242 = vld [vmem:[%s161 + $0x48] sm:$0xff]
      %v243 = vld [vmem:[%s161 + $0x50] sm:$0xff]
      %v244 = vld [vmem:[%s161 + $0x58] sm:$0xff]
      %v245 = vld [vmem:[%s161 + $0x60] sm:$0xff]
      %v246 = vld [vmem:[%s161 + $0x68] sm:$0xff]
      %v247 = vld [vmem:[%s161 + $0x70] sm:$0xff]
      %v248 = vld [vmem:[%s161 + $0x78] sm:$0xff]
      %v249 = vld [vmem:[%s161 + $0x80] sm:$0xff]
      %v250 = vld [vmem:[%s161 + $0x88] sm:$0xff]
      %v251 = vld [vmem:[%s161 + $0x90] sm:$0xff]
      %v252 = vld [vmem:[%s161 + $0x98] sm:$0xff]
      %v253 = vld [vmem:[%s161 + $0xa0] sm:$0xff]
      %v254 = vld [vmem:[%s161 + $0xa8] sm:$0xff]
      %v255 = vld [vmem:[%s161 + $0xb0] sm:$0xff]
      %v256 = vld [vmem:[%s161 + $0xb8] sm:$0xff]
      %v257 = vld [vmem:[%s161 + $0xc0] sm:$0xff]
      %v258 = vld [vmem:[%s161 + $0xc8] sm:$0xff]
      %v259 = vld [vmem:[%s161 + $0xd0] sm:$0xff]
      %v260 = vld [vmem:[%s161 + $0xd8] sm:$0xff]
      %v261 = vld [vmem:[%s161 + $0xe0] sm:$0xff]
      %v262 = vld [vmem:[%s161 + $0xe8] sm:$0xff]
      %v263 = vld [vmem:[%s161 + $0xf0] sm:$0xff]
      %v264 = vld [vmem:[%s161 + $0xf8] sm:$0xff]
      %v265 = vld [vmem:[%s161 + $0x100] sm:$0xff]
      %v266 = vld [vmem:[%s161 + $0x108] sm:$0xff]
      %v267 = vld [vmem:[%s161 + $0x110] sm:$0xff]
      %v268 = vld [vmem:[%s161 + $0x118] sm:$0xff]
      %v269 = vld [vmem:[%s161 + $0x120] sm:$0xff]
      %v270 = vld [vmem:[%s161 + $0x128] sm:$0xff]
      %v271 = vld [vmem:[%s161 + $0x130] sm:$0xff]
      %v272 = vld [vmem:[%s161 + $0x138] sm:$0xff]
      %v273 = vld [vmem:[%s161 + $0x140] sm:$0xff]
      %v274 = vld [vmem:[%s161 + $0x148] sm:$0xff]
      %v275 = vld [vmem:[%s161 + $0x150] sm:$0xff]
      %v276 = vld [vmem:[%s161 + $0x158] sm:$0xff]
      %v277 = vld [vmem:[%s161 + $0x160] sm:$0xff]
      %v278 = vld [vmem:[%s161 + $0x168] sm:$0xff]
      %v279 = vld [vmem:[%s161 + $0x170] sm:$0xff]
      %v280 = vld [vmem:[%s161 + $0x178] sm:$0xff]
      %v281 = vld [vmem:[%s161 + $0x180] sm:$0xff]
      %v282 = vld [vmem:[%s161 + $0x188] sm:$0xff]
      %v283 = vld [vmem:[%s161 + $0x190] sm:$0xff]
      %v284 = vld [vmem:[%s161 + $0x198] sm:$0xff]
      %v285 = vld [vmem:[%s161 + $0x1a0] sm:$0xff]
      %v286 = vld [vmem:[%s161 + $0x1a8] sm:$0xff]
      %v287 = vld [vmem:[%s161 + $0x1b0] sm:$0xff]
      %v288 = vld [vmem:[%s161 + $0x1b8] sm:$0xff]
      %v289 = vld [vmem:[%s161 + $0x1c0] sm:$0xff]
      %v290 = vld [vmem:[%s161 + $0x1c8] sm:$0xff]
      %v291 = vld [vmem:[%s161 + $0x1d0] sm:$0xff]
      %v292 = vld [vmem:[%s161 + $0x1d8] sm:$0xff]
      %v293 = vld [vmem:[%s161 + $0x1e0] sm:$0xff]
      %v294 = vld [vmem:[%s161 + $0x1e8] sm:$0xff]
      %v295 = vld [vmem:[%s161 + $0x1f0] sm:$0xff]
      %v296 = vld [vmem:[%s161 + $0x1f8] sm:$0xff]
      %361 = vrot.lane.b32.xlu0 %v233, 8
      %v362 = vpop.permute.xlu0 %361
      %363 = vrot.lane.b32.xlu0 %v234, 8
      %v364 = vpop.permute.xlu0 %363
      %365 = vrot.lane.b32.xlu0 %v235, 8
      %v366 = vpop.permute.xlu0 %365
      %367 = vrot.lane.b32.xlu0 %v236, 8
      %v368 = vpop.permute.xlu0 %367
      %369 = vrot.lane.b32.xlu0 %v237, 8
      %v370 = vpop.permute.xlu0 %369
      %371 = vrot.lane.b32.xlu0 %v238, 8
      %v372 = vpop.permute.xlu0 %371
      %373 = vrot.lane.b32.xlu0 %v239, 8
      %v374 = vpop.permute.xlu0 %373
      %375 = vrot.lane.b32.xlu0 %v240, 8
      %v376 = vpop.permute.xlu0 %375
      %377 = vrot.lane.b32.xlu0 %v241, 8
      %v378 = vpop.permute.xlu0 %377
      %379 = vrot.lane.b32.xlu0 %v242, 8
      %v380 = vpop.permute.xlu0 %379
      %381 = vrot.lane.b32.xlu0 %v243, 8
      %v382 = vpop.permute.xlu0 %381
      %383 = vrot.lane.b32.xlu0 %v244, 8
      %v384 = vpop.permute.xlu0 %383
      %385 = vrot.lane.b32.xlu0 %v245, 8
      %v386 = vpop.permute.xlu0 %385
      %387 = vrot.lane.b32.xlu0 %v246, 8
      %v388 = vpop.permute.xlu0 %387
      %389 = vrot.lane.b32.xlu0 %v247, 8
      %v390 = vpop.permute.xlu0 %389
      %391 = vrot.lane.b32.xlu0 %v248, 8
      %v392 = vpop.permute.xlu0 %391
      %393 = vrot.lane.b32.xlu0 %v249, 8
      %v394 = vpop.permute.xlu0 %393
      %395 = vrot.lane.b32.xlu0 %v250, 8
      %v396 = vpop.permute.xlu0 %395
      %397 = vrot.lane.b32.xlu0 %v251, 8
      %v398 = vpop.permute.xlu0 %397
      %399 = vrot.lane.b32.xlu0 %v252, 8
      %v400 = vpop.permute.xlu0 %399
      %401 = vrot.lane.b32.xlu0 %v253, 8
      %v402 = vpop.permute.xlu0 %401
      %403 = vrot.lane.b32.xlu0 %v254, 8
      %v404 = vpop.permute.xlu0 %403
      %405 = vrot.lane.b32.xlu0 %v255, 8
      %v406 = vpop.permute.xlu0 %405
      %407 = vrot.lane.b32.xlu0 %v256, 8
      %v408 = vpop.permute.xlu0 %407
      %409 = vrot.lane.b32.xlu0 %v257, 8
      %v410 = vpop.permute.xlu0 %409
      %411 = vrot.lane.b32.xlu0 %v258, 8
      %v412 = vpop.permute.xlu0 %411
      %413 = vrot.lane.b32.xlu0 %v259, 8
      %v414 = vpop.permute.xlu0 %413
      %415 = vrot.lane.b32.xlu0 %v260, 8
      %v416 = vpop.permute.xlu0 %415
      %417 = vrot.lane.b32.xlu0 %v261, 8
      %v418 = vpop.permute.xlu0 %417
      %419 = vrot.lane.b32.xlu0 %v262, 8
      %v420 = vpop.permute.xlu0 %419
      %421 = vrot.lane.b32.xlu0 %v263, 8
      %v422 = vpop.permute.xlu0 %421
      %423 = vrot.lane.b32.xlu0 %v264, 8
      %v424 = vpop.permute.xlu0 %423
      %425 = vrot.lane.b32.xlu0 %v265, 8
      %v426 = vpop.permute.xlu0 %425
      %427 = vrot.lane.b32.xlu0 %v266, 8
      %v428 = vpop.permute.xlu0 %427
      %429 = vrot.lane.b32.xlu0 %v267, 8
      %v430 = vpop.permute.xlu0 %429
      %431 = vrot.lane.b32.xlu0 %v268, 8
      %v432 = vpop.permute.xlu0 %431
      %433 = vrot.lane.b32.xlu0 %v269, 8
      %v434 = vpop.permute.xlu0 %433
      %435 = vrot.lane.b32.xlu0 %v270, 8
      %v436 = vpop.permute.xlu0 %435
      %437 = vrot.lane.b32.xlu0 %v271, 8
      %v438 = vpop.permute.xlu0 %437
      %439 = vrot.lane.b32.xlu0 %v272, 8
      %v440 = vpop.permute.xlu0 %439
      %441 = vrot.lane.b32.xlu0 %v273, 8
      %v442 = vpop.permute.xlu0 %441
      %443 = vrot.lane.b32.xlu0 %v274, 8
      %v444 = vpop.permute.xlu0 %443
      %445 = vrot.lane.b32.xlu0 %v275, 8
      %v446 = vpop.permute.xlu0 %445
      %447 = vrot.lane.b32.xlu0 %v276, 8
      %v448 = vpop.permute.xlu0 %447
      %449 = vrot.lane.b32.xlu0 %v277, 8
      %v450 = vpop.permute.xlu0 %449
      %451 = vrot.lane.b32.xlu0 %v278, 8
      %v452 = vpop.permute.xlu0 %451
      %453 = vrot.lane.b32.xlu0 %v279, 8
      %v454 = vpop.permute.xlu0 %453
      %455 = vrot.lane.b32.xlu0 %v280, 8
      %v456 = vpop.permute.xlu0 %455
      %457 = vrot.lane.b32.xlu0 %v281, 8
      %v458 = vpop.permute.xlu0 %457
      %459 = vrot.lane.b32.xlu0 %v282, 8
      %v460 = vpop.permute.xlu0 %459
      %461 = vrot.lane.b32.xlu0 %v283, 8
      %v462 = vpop.permute.xlu0 %461
      %463 = vrot.lane.b32.xlu0 %v284, 8
      %v464 = vpop.permute.xlu0 %463
      %465 = vrot.lane.b32.xlu0 %v285, 8
      %v466 = vpop.permute.xlu0 %465
      %467 = vrot.lane.b32.xlu0 %v286, 8
      %v468 = vpop.permute.xlu0 %467
      %469 = vrot.lane.b32.xlu0 %v287, 8
      %v470 = vpop.permute.xlu0 %469
      %471 = vrot.lane.b32.xlu0 %v288, 8
      %v472 = vpop.permute.xlu0 %471
      %473 = vrot.lane.b32.xlu0 %v289, 8
      %v474 = vpop.permute.xlu0 %473
      %475 = vrot.lane.b32.xlu0 %v290, 8
      %v476 = vpop.permute.xlu0 %475
      %477 = vrot.lane.b32.xlu0 %v291, 8
      %v478 = vpop.permute.xlu0 %477
      %479 = vrot.lane.b32.xlu0 %v292, 8
      %v480 = vpop.permute.xlu0 %479
      %481 = vrot.lane.b32.xlu0 %v293, 8
      %v482 = vpop.permute.xlu0 %481
      %483 = vrot.lane.b32.xlu0 %v294, 8
      %v484 = vpop.permute.xlu0 %483
      %485 = vrot.lane.b32.xlu0 %v295, 8
      %v486 = vpop.permute.xlu0 %485
      %487 = vrot.lane.b32.xlu0 %v296, 8
      %v488 = vpop.permute.xlu0 %487
      %617 = vrot.lane.b32.xlu0 %v169, 6
      %v618 = vpop.permute.xlu0 %617
      %619 = vrot.lane.b32.xlu0 %v170, 6
      %v620 = vpop.permute.xlu0 %619
      %621 = vrot.lane.b32.xlu0 %v171, 6
      %v622 = vpop.permute.xlu0 %621
      %623 = vrot.lane.b32.xlu0 %v172, 6
      %v624 = vpop.permute.xlu0 %623
      %625 = vrot.lane.b32.xlu0 %v173, 6
      %v626 = vpop.permute.xlu0 %625
      %627 = vrot.lane.b32.xlu0 %v174, 6
      %v628 = vpop.permute.xlu0 %627
      %629 = vrot.lane.b32.xlu0 %v175, 6
      %v630 = vpop.permute.xlu0 %629
      %631 = vrot.lane.b32.xlu0 %v176, 6
      %v632 = vpop.permute.xlu0 %631
      %633 = vrot.lane.b32.xlu0 %v177, 6
      %v634 = vpop.permute.xlu0 %633
      %635 = vrot.lane.b32.xlu0 %v178, 6
      %v636 = vpop.permute.xlu0 %635
      %637 = vrot.lane.b32.xlu0 %v179, 6
      %v638 = vpop.permute.xlu0 %637
      %639 = vrot.lane.b32.xlu0 %v180, 6
      %v640 = vpop.permute.xlu0 %639
      %641 = vrot.lane.b32.xlu0 %v181, 6
      %v642 = vpop.permute.xlu0 %641
      %643 = vrot.lane.b32.xlu0 %v182, 6
      %v644 = vpop.permute.xlu0 %643
      %645 = vrot.lane.b32.xlu0 %v183, 6
      %v646 = vpop.permute.xlu0 %645
      %647 = vrot.lane.b32.xlu0 %v184, 6
      %v648 = vpop.permute.xlu0 %647
      %649 = vrot.lane.b32.xlu0 %v185, 6
      %v650 = vpop.permute.xlu0 %649
      %651 = vrot.lane.b32.xlu0 %v186, 6
      %v652 = vpop.permute.xlu0 %651
      %653 = vrot.lane.b32.xlu0 %v187, 6
      %v654 = vpop.permute.xlu0 %653
      %655 = vrot.lane.b32.xlu0 %v188, 6
      %v656 = vpop.permute.xlu0 %655
      %657 = vrot.lane.b32.xlu0 %v189, 6
      %v658 = vpop.permute.xlu0 %657
      %659 = vrot.lane.b32.xlu0 %v190, 6
      %v660 = vpop.permute.xlu0 %659
      %661 = vrot.lane.b32.xlu0 %v191, 6
      %v662 = vpop.permute.xlu0 %661
      %663 = vrot.lane.b32.xlu0 %v192, 6
      %v664 = vpop.permute.xlu0 %663
      %665 = vrot.lane.b32.xlu0 %v193, 6
      %v666 = vpop.permute.xlu0 %665
      %667 = vrot.lane.b32.xlu0 %v194, 6
      %v668 = vpop.permute.xlu0 %667
      %669 = vrot.lane.b32.xlu0 %v195, 6
      %v670 = vpop.permute.xlu0 %669
      %671 = vrot.lane.b32.xlu0 %v196, 6
      %v672 = vpop.permute.xlu0 %671
      %673 = vrot.lane.b32.xlu0 %v197, 6
      %v674 = vpop.permute.xlu0 %673
      %675 = vrot.lane.b32.xlu0 %v198, 6
      %v676 = vpop.permute.xlu0 %675
      %677 = vrot.lane.b32.xlu0 %v199, 6
      %v678 = vpop.permute.xlu0 %677
      %679 = vrot.lane.b32.xlu0 %v200, 6
      %v680 = vpop.permute.xlu0 %679
      %681 = vrot.lane.b32.xlu0 %v201, 6
      %v682 = vpop.permute.xlu0 %681
      %683 = vrot.lane.b32.xlu0 %v202, 6
      %v684 = vpop.permute.xlu0 %683
      %685 = vrot.lane.b32.xlu0 %v203, 6
      %v686 = vpop.permute.xlu0 %685
      %687 = vrot.lane.b32.xlu0 %v204, 6
      %v688 = vpop.permute.xlu0 %687
      %689 = vrot.lane.b32.xlu0 %v205, 6
      %v690 = vpop.permute.xlu0 %689
      %691 = vrot.lane.b32.xlu0 %v206, 6
      %v692 = vpop.permute.xlu0 %691
      %693 = vrot.lane.b32.xlu0 %v207, 6
      %v694 = vpop.permute.xlu0 %693
      %695 = vrot.lane.b32.xlu0 %v208, 6
      %v696 = vpop.permute.xlu0 %695
      %697 = vrot.lane.b32.xlu0 %v209, 6
      %v698 = vpop.permute.xlu0 %697
      %699 = vrot.lane.b32.xlu0 %v210, 6
      %v700 = vpop.permute.xlu0 %699
      %701 = vrot.lane.b32.xlu0 %v211, 6
      %v702 = vpop.permute.xlu0 %701
      %703 = vrot.lane.b32.xlu0 %v212, 6
      %v704 = vpop.permute.xlu0 %703
      %705 = vrot.lane.b32.xlu0 %v213, 6
      %v706 = vpop.permute.xlu0 %705
      %707 = vrot.lane.b32.xlu0 %v214, 6
      %v708 = vpop.permute.xlu0 %707
      %709 = vrot.lane.b32.xlu0 %v215, 6
      %v710 = vpop.permute.xlu0 %709
      %711 = vrot.lane.b32.xlu0 %v216, 6
      %v712 = vpop.permute.xlu0 %711
      %713 = vrot.lane.b32.xlu0 %v217, 6
      %v714 = vpop.permute.xlu0 %713
      %715 = vrot.lane.b32.xlu0 %v218, 6
      %v716 = vpop.permute.xlu0 %715
      %717 = vrot.lane.b32.xlu0 %v219, 6
      %v718 = vpop.permute.xlu0 %717
      %719 = vrot.lane.b32.xlu0 %v220, 6
      %v720 = vpop.permute.xlu0 %719
      %721 = vrot.lane.b32.xlu0 %v221, 6
      %v722 = vpop.permute.xlu0 %721
      %723 = vrot.lane.b32.xlu0 %v222, 6
      %v724 = vpop.permute.xlu0 %723
      %725 = vrot.lane.b32.xlu0 %v223, 6
      %v726 = vpop.permute.xlu0 %725
      %727 = vrot.lane.b32.xlu0 %v224, 6
      %v728 = vpop.permute.xlu0 %727
      %729 = vrot.lane.b32.xlu0 %v225, 6
      %v730 = vpop.permute.xlu0 %729
      %731 = vrot.lane.b32.xlu0 %v226, 6
      %v732 = vpop.permute.xlu0 %731
      %733 = vrot.lane.b32.xlu0 %v227, 6
      %v734 = vpop.permute.xlu0 %733
      %735 = vrot.lane.b32.xlu0 %v228, 6
      %v736 = vpop.permute.xlu0 %735
      %737 = vrot.lane.b32.xlu0 %v229, 6
      %v738 = vpop.permute.xlu0 %737
      %739 = vrot.lane.b32.xlu0 %v230, 6
      %v740 = vpop.permute.xlu0 %739
      %741 = vrot.lane.b32.xlu0 %v231, 6
      %v742 = vpop.permute.xlu0 %741
      %743 = vrot.lane.b32.xlu0 %v232, 6
      %v744 = vpop.permute.xlu0 %743
      %809 = vrot.lane.b32.xlu0 %v233, 20
      %v810 = vpop.permute.xlu0 %809
      %811 = vrot.lane.b32.xlu0 %v234, 20
      %v812 = vpop.permute.xlu0 %811
      %813 = vrot.lane.b32.xlu0 %v235, 20
      %v814 = vpop.permute.xlu0 %813
      %815 = vrot.lane.b32.xlu0 %v236, 20
      %v816 = vpop.permute.xlu0 %815
      %817 = vrot.lane.b32.xlu0 %v237, 20
      %v818 = vpop.permute.xlu0 %817
      %819 = vrot.lane.b32.xlu0 %v238, 20
      %v820 = vpop.permute.xlu0 %819
      %821 = vrot.lane.b32.xlu0 %v239, 20
      %v822 = vpop.permute.xlu0 %821
      %823 = vrot.lane.b32.xlu0 %v240, 20
      %v824 = vpop.permute.xlu0 %823
      %825 = vrot.lane.b32.xlu0 %v241, 20
      %v826 = vpop.permute.xlu0 %825
      %827 = vrot.lane.b32.xlu0 %v242, 20
      %v828 = vpop.permute.xlu0 %827
      %829 = vrot.lane.b32.xlu0 %v243, 20
      %v830 = vpop.permute.xlu0 %829
      %831 = vrot.lane.b32.xlu0 %v244, 20
      %v832 = vpop.permute.xlu0 %831
      %833 = vrot.lane.b32.xlu0 %v245, 20
      %v834 = vpop.permute.xlu0 %833
      %835 = vrot.lane.b32.xlu0 %v246, 20
      %v836 = vpop.permute.xlu0 %835
      %837 = vrot.lane.b32.xlu0 %v247, 20
      %v838 = vpop.permute.xlu0 %837
      %839 = vrot.lane.b32.xlu0 %v248, 20
      %v840 = vpop.permute.xlu0 %839
      %841 = vrot.lane.b32.xlu0 %v249, 20
      %v842 = vpop.permute.xlu0 %841
      %843 = vrot.lane.b32.xlu0 %v250, 20
      %v844 = vpop.permute.xlu0 %843
      %845 = vrot.lane.b32.xlu0 %v251, 20
      %v846 = vpop.permute.xlu0 %845
      %847 = vrot.lane.b32.xlu0 %v252, 20
      %v848 = vpop.permute.xlu0 %847
      %849 = vrot.lane.b32.xlu0 %v253, 20
      %v850 = vpop.permute.xlu0 %849
      %851 = vrot.lane.b32.xlu0 %v254, 20
      %v852 = vpop.permute.xlu0 %851
      %853 = vrot.lane.b32.xlu0 %v255, 20
      %v854 = vpop.permute.xlu0 %853
      %855 = vrot.lane.b32.xlu0 %v256, 20
      %v856 = vpop.permute.xlu0 %855
      %857 = vrot.lane.b32.xlu0 %v257, 20
      %v858 = vpop.permute.xlu0 %857
      %859 = vrot.lane.b32.xlu0 %v258, 20
      %v860 = vpop.permute.xlu0 %859
      %861 = vrot.lane.b32.xlu0 %v259, 20
      %v862 = vpop.permute.xlu0 %861
      %863 = vrot.lane.b32.xlu0 %v260, 20
      %v864 = vpop.permute.xlu0 %863
      %865 = vrot.lane.b32.xlu0 %v261, 20
      %v866 = vpop.permute.xlu0 %865
      %867 = vrot.lane.b32.xlu0 %v262, 20
      %v868 = vpop.permute.xlu0 %867
      %869 = vrot.lane.b32.xlu0 %v263, 20
      %v870 = vpop.permute.xlu0 %869
      %871 = vrot.lane.b32.xlu0 %v264, 20
      %v872 = vpop.permute.xlu0 %871
      %873 = vrot.lane.b32.xlu0 %v265, 20
      %v874 = vpop.permute.xlu0 %873
      %875 = vrot.lane.b32.xlu0 %v266, 20
      %v876 = vpop.permute.xlu0 %875
      %877 = vrot.lane.b32.xlu0 %v267, 20
      %v878 = vpop.permute.xlu0 %877
      %879 = vrot.lane.b32.xlu0 %v268, 20
      %v880 = vpop.permute.xlu0 %879
      %881 = vrot.lane.b32.xlu0 %v269, 20
      %v882 = vpop.permute.xlu0 %881
      %883 = vrot.lane.b32.xlu0 %v270, 20
      %v884 = vpop.permute.xlu0 %883
      %885 = vrot.lane.b32.xlu0 %v271, 20
      %v886 = vpop.permute.xlu0 %885
      %887 = vrot.lane.b32.xlu0 %v272, 20
      %v888 = vpop.permute.xlu0 %887
      %889 = vrot.lane.b32.xlu0 %v273, 20
      %v890 = vpop.permute.xlu0 %889
      %891 = vrot.lane.b32.xlu0 %v274, 20
      %v892 = vpop.permute.xlu0 %891
      %893 = vrot.lane.b32.xlu0 %v275, 20
      %v894 = vpop.permute.xlu0 %893
      %895 = vrot.lane.b32.xlu0 %v276, 20
      %v896 = vpop.permute.xlu0 %895
      %897 = vrot.lane.b32.xlu0 %v277, 20
      %v898 = vpop.permute.xlu0 %897
      %899 = vrot.lane.b32.xlu0 %v278, 20
      %v900 = vpop.permute.xlu0 %899
      %901 = vrot.lane.b32.xlu0 %v279, 20
      %v902 = vpop.permute.xlu0 %901
      %903 = vrot.lane.b32.xlu0 %v280, 20
      %v904 = vpop.permute.xlu0 %903
      %905 = vrot.lane.b32.xlu0 %v281, 20
      %v906 = vpop.permute.xlu0 %905
      %907 = vrot.lane.b32.xlu0 %v282, 20
      %v908 = vpop.permute.xlu0 %907
      %909 = vrot.lane.b32.xlu0 %v283, 20
      %v910 = vpop.permute.xlu0 %909
      %911 = vrot.lane.b32.xlu0 %v284, 20
      %v912 = vpop.permute.xlu0 %911
      %913 = vrot.lane.b32.xlu0 %v285, 20
      %v914 = vpop.permute.xlu0 %913
      %915 = vrot.lane.b32.xlu0 %v286, 20
      %v916 = vpop.permute.xlu0 %915
      %917 = vrot.lane.b32.xlu0 %v287, 20
      %v918 = vpop.permute.xlu0 %917
      %919 = vrot.lane.b32.xlu0 %v288, 20
      %v920 = vpop.permute.xlu0 %919
      %921 = vrot.lane.b32.xlu0 %v289, 20
      %v922 = vpop.permute.xlu0 %921
      %923 = vrot.lane.b32.xlu0 %v290, 20
      %v924 = vpop.permute.xlu0 %923
      %925 = vrot.lane.b32.xlu0 %v291, 20
      %v926 = vpop.permute.xlu0 %925
      %927 = vrot.lane.b32.xlu0 %v292, 20
      %v928 = vpop.permute.xlu0 %927
      %929 = vrot.lane.b32.xlu0 %v293, 20
      %v930 = vpop.permute.xlu0 %929
      %931 = vrot.lane.b32.xlu0 %v294, 20
      %v932 = vpop.permute.xlu0 %931
      %933 = vrot.lane.b32.xlu0 %v295, 20
      %v934 = vpop.permute.xlu0 %933
      %935 = vrot.lane.b32.xlu0 %v296, 20
      %v936 = vpop.permute.xlu0 %935
      %1001 = vrot.lane.b32.xlu0 %v169, 26
      %v1002 = vpop.permute.xlu0 %1001
      %1003 = vrot.lane.b32.xlu0 %v170, 26
      %v1004 = vpop.permute.xlu0 %1003
      %1005 = vrot.lane.b32.xlu0 %v171, 26
      %v1006 = vpop.permute.xlu0 %1005
      %1007 = vrot.lane.b32.xlu0 %v172, 26
      %v1008 = vpop.permute.xlu0 %1007
      %1009 = vrot.lane.b32.xlu0 %v173, 26
      %v1010 = vpop.permute.xlu0 %1009
      %1011 = vrot.lane.b32.xlu0 %v174, 26
      %v1012 = vpop.permute.xlu0 %1011
      %1013 = vrot.lane.b32.xlu0 %v175, 26
      %v1014 = vpop.permute.xlu0 %1013
      %1015 = vrot.lane.b32.xlu0 %v176, 26
      %v1016 = vpop.permute.xlu0 %1015
      %1017 = vrot.lane.b32.xlu0 %v177, 26
      %v1018 = vpop.permute.xlu0 %1017
      %1019 = vrot.lane.b32.xlu0 %v178, 26
      %v1020 = vpop.permute.xlu0 %1019
      %1021 = vrot.lane.b32.xlu0 %v179, 26
      %v1022 = vpop.permute.xlu0 %1021
      %1023 = vrot.lane.b32.xlu0 %v180, 26
      %v1024 = vpop.permute.xlu0 %1023
      %1025 = vrot.lane.b32.xlu0 %v181, 26
      %v1026 = vpop.permute.xlu0 %1025
      %1027 = vrot.lane.b32.xlu0 %v182, 26
      %v1028 = vpop.permute.xlu0 %1027
      %1029 = vrot.lane.b32.xlu0 %v183, 26
      %v1030 = vpop.permute.xlu0 %1029
      %1031 = vrot.lane.b32.xlu0 %v184, 26
      %v1032 = vpop.permute.xlu0 %1031
      %1033 = vrot.lane.b32.xlu0 %v185, 26
      %v1034 = vpop.permute.xlu0 %1033
      %1035 = vrot.lane.b32.xlu0 %v186, 26
      %v1036 = vpop.permute.xlu0 %1035
      %1037 = vrot.lane.b32.xlu0 %v187, 26
      %v1038 = vpop.permute.xlu0 %1037
      %1039 = vrot.lane.b32.xlu0 %v188, 26
      %v1040 = vpop.permute.xlu0 %1039
      %1041 = vrot.lane.b32.xlu0 %v189, 26
      %v1042 = vpop.permute.xlu0 %1041
      %1043 = vrot.lane.b32.xlu0 %v190, 26
      %v1044 = vpop.permute.xlu0 %1043
      %1045 = vrot.lane.b32.xlu0 %v191, 26
      %v1046 = vpop.permute.xlu0 %1045
      %1047 = vrot.lane.b32.xlu0 %v192, 26
      %v1048 = vpop.permute.xlu0 %1047
      %1049 = vrot.lane.b32.xlu0 %v193, 26
      %v1050 = vpop.permute.xlu0 %1049
      %1051 = vrot.lane.b32.xlu0 %v194, 26
      %v1052 = vpop.permute.xlu0 %1051
      %1053 = vrot.lane.b32.xlu0 %v195, 26
      %v1054 = vpop.permute.xlu0 %1053
      %1055 = vrot.lane.b32.xlu0 %v196, 26
      %v1056 = vpop.permute.xlu0 %1055
      %1057 = vrot.lane.b32.xlu0 %v197, 26
      %v1058 = vpop.permute.xlu0 %1057
      %1059 = vrot.lane.b32.xlu0 %v198, 26
      %v1060 = vpop.permute.xlu0 %1059
      %1061 = vrot.lane.b32.xlu0 %v199, 26
      %v1062 = vpop.permute.xlu0 %1061
      %1063 = vrot.lane.b32.xlu0 %v200, 26
      %v1064 = vpop.permute.xlu0 %1063
      %1065 = vrot.lane.b32.xlu0 %v201, 26
      %v1066 = vpop.permute.xlu0 %1065
      %1067 = vrot.lane.b32.xlu0 %v202, 26
      %v1068 = vpop.permute.xlu0 %1067
      %1069 = vrot.lane.b32.xlu0 %v203, 26
      %v1070 = vpop.permute.xlu0 %1069
      %1071 = vrot.lane.b32.xlu0 %v204, 26
      %v1072 = vpop.permute.xlu0 %1071
      %1073 = vrot.lane.b32.xlu0 %v205, 26
      %v1074 = vpop.permute.xlu0 %1073
      %1075 = vrot.lane.b32.xlu0 %v206, 26
      %v1076 = vpop.permute.xlu0 %1075
      %1077 = vrot.lane.b32.xlu0 %v207, 26
      %v1078 = vpop.permute.xlu0 %1077
      %1079 = vrot.lane.b32.xlu0 %v208, 26
      %v1080 = vpop.permute.xlu0 %1079
      %1081 = vrot.lane.b32.xlu0 %v209, 26
      %v1082 = vpop.permute.xlu0 %1081
      %1083 = vrot.lane.b32.xlu0 %v210, 26
      %v1084 = vpop.permute.xlu0 %1083
      %1085 = vrot.lane.b32.xlu0 %v211, 26
      %v1086 = vpop.permute.xlu0 %1085
      %1087 = vrot.lane.b32.xlu0 %v212, 26
      %v1088 = vpop.permute.xlu0 %1087
      %1089 = vrot.lane.b32.xlu0 %v213, 26
      %v1090 = vpop.permute.xlu0 %1089
      %1091 = vrot.lane.b32.xlu0 %v214, 26
      %v1092 = vpop.permute.xlu0 %1091
      %1093 = vrot.lane.b32.xlu0 %v215, 26
      %v1094 = vpop.permute.xlu0 %1093
      %1095 = vrot.lane.b32.xlu0 %v216, 26
      %v1096 = vpop.permute.xlu0 %1095
      %1097 = vrot.lane.b32.xlu0 %v217, 26
      %v1098 = vpop.permute.xlu0 %1097
      %1099 = vrot.lane.b32.xlu0 %v218, 26
      %v1100 = vpop.permute.xlu0 %1099
      %1101 = vrot.lane.b32.xlu0 %v219, 26
      %v1102 = vpop.permute.xlu0 %1101
      %1103 = vrot.lane.b32.xlu0 %v220, 26
      %v1104 = vpop.permute.xlu0 %1103
      %1105 = vrot.lane.b32.xlu0 %v221, 26
      %v1106 = vpop.permute.xlu0 %1105
      %1107 = vrot.lane.b32.xlu0 %v222, 26
      %v1108 = vpop.permute.xlu0 %1107
      %1109 = vrot.lane.b32.xlu0 %v223, 26
      %v1110 = vpop.permute.xlu0 %1109
      %1111 = vrot.lane.b32.xlu0 %v224, 26
      %v1112 = vpop.permute.xlu0 %1111
      %1113 = vrot.lane.b32.xlu0 %v225, 26
      %v1114 = vpop.permute.xlu0 %1113
      %1115 = vrot.lane.b32.xlu0 %v226, 26
      %v1116 = vpop.permute.xlu0 %1115
      %1117 = vrot.lane.b32.xlu0 %v227, 26
      %v1118 = vpop.permute.xlu0 %1117
      %1119 = vrot.lane.b32.xlu0 %v228, 26
      %v1120 = vpop.permute.xlu0 %1119
      %1121 = vrot.lane.b32.xlu0 %v229, 26
      %v1122 = vpop.permute.xlu0 %1121
      %1123 = vrot.lane.b32.xlu0 %v230, 26
      %v1124 = vpop.permute.xlu0 %1123
      %1125 = vrot.lane.b32.xlu0 %v231, 26
      %v1126 = vpop.permute.xlu0 %1125
      %1127 = vrot.lane.b32.xlu0 %v232, 26
      %v1128 = vpop.permute.xlu0 %1127
      %vm1193 = vcmask 64512
      %v1194 = vsel %vm1193, %v169, %v362
      %v1195 = vsel %vm1193, %v170, %v364
      %v1196 = vsel %vm1193, %v171, %v366
      %v1197 = vsel %vm1193, %v172, %v368
      %v1198 = vsel %vm1193, %v173, %v370
      %v1199 = vsel %vm1193, %v174, %v372
      %v1200 = vsel %vm1193, %v175, %v374
      %v1201 = vsel %vm1193, %v176, %v376
      %v1202 = vsel %vm1193, %v177, %v378
      %v1203 = vsel %vm1193, %v178, %v380
      %v1204 = vsel %vm1193, %v179, %v382
      %v1205 = vsel %vm1193, %v180, %v384
      %v1206 = vsel %vm1193, %v181, %v386
      %v1207 = vsel %vm1193, %v182, %v388
      %v1208 = vsel %vm1193, %v183, %v390
      %v1209 = vsel %vm1193, %v184, %v392
      %v1210 = vsel %vm1193, %v185, %v394
      %v1211 = vsel %vm1193, %v186, %v396
      %v1212 = vsel %vm1193, %v187, %v398
      %v1213 = vsel %vm1193, %v188, %v400
      %v1214 = vsel %vm1193, %v189, %v402
      %v1215 = vsel %vm1193, %v190, %v404
      %v1216 = vsel %vm1193, %v191, %v406
      %v1217 = vsel %vm1193, %v192, %v408
      %v1218 = vsel %vm1193, %v193, %v410
      %v1219 = vsel %vm1193, %v194, %v412
      %v1220 = vsel %vm1193, %v195, %v414
      %v1221 = vsel %vm1193, %v196, %v416
      %v1222 = vsel %vm1193, %v197, %v418
      %v1223 = vsel %vm1193, %v198, %v420
      %v1224 = vsel %vm1193, %v199, %v422
      %v1225 = vsel %vm1193, %v200, %v424
      %v1226 = vsel %vm1193, %v201, %v426
      %v1227 = vsel %vm1193, %v202, %v428
      %v1228 = vsel %vm1193, %v203, %v430
      %v1229 = vsel %vm1193, %v204, %v432
      %v1230 = vsel %vm1193, %v205, %v434
      %v1231 = vsel %vm1193, %v206, %v436
      %v1232 = vsel %vm1193, %v207, %v438
      %v1233 = vsel %vm1193, %v208, %v440
      %v1234 = vsel %vm1193, %v209, %v442
      %v1235 = vsel %vm1193, %v210, %v444
      %v1236 = vsel %vm1193, %v211, %v446
      %v1237 = vsel %vm1193, %v212, %v448
      %v1238 = vsel %vm1193, %v213, %v450
      %v1239 = vsel %vm1193, %v214, %v452
      %v1240 = vsel %vm1193, %v215, %v454
      %v1241 = vsel %vm1193, %v216, %v456
      %v1242 = vsel %vm1193, %v217, %v458
      %v1243 = vsel %vm1193, %v218, %v460
      %v1244 = vsel %vm1193, %v219, %v462
      %v1245 = vsel %vm1193, %v220, %v464
      %v1246 = vsel %vm1193, %v221, %v466
      %v1247 = vsel %vm1193, %v222, %v468
      %v1248 = vsel %vm1193, %v223, %v470
      %v1249 = vsel %vm1193, %v224, %v472
      %v1250 = vsel %vm1193, %v225, %v474
      %v1251 = vsel %vm1193, %v226, %v476
      %v1252 = vsel %vm1193, %v227, %v478
      %v1253 = vsel %vm1193, %v228, %v480
      %v1254 = vsel %vm1193, %v229, %v482
      %v1255 = vsel %vm1193, %v230, %v484
      %v1256 = vsel %vm1193, %v231, %v486
      %v1257 = vsel %vm1193, %v232, %v488
      %vm1258 = vcmask 113664
      %v1259 = vsel %vm1258, %v1194, %v618
      %v1260 = vsel %vm1258, %v1195, %v620
      %v1261 = vsel %vm1258, %v1196, %v622
      %v1262 = vsel %vm1258, %v1197, %v624
      %v1263 = vsel %vm1258, %v1198, %v626
      %v1264 = vsel %vm1258, %v1199, %v628
      %v1265 = vsel %vm1258, %v1200, %v630
      %v1266 = vsel %vm1258, %v1201, %v632
      %v1267 = vsel %vm1258, %v1202, %v634
      %v1268 = vsel %vm1258, %v1203, %v636
      %v1269 = vsel %vm1258, %v1204, %v638
      %v1270 = vsel %vm1258, %v1205, %v640
      %v1271 = vsel %vm1258, %v1206, %v642
      %v1272 = vsel %vm1258, %v1207, %v644
      %v1273 = vsel %vm1258, %v1208, %v646
      %v1274 = vsel %vm1258, %v1209, %v648
      %v1275 = vsel %vm1258, %v1210, %v650
      %v1276 = vsel %vm1258, %v1211, %v652
      %v1277 = vsel %vm1258, %v1212, %v654
      %v1278 = vsel %vm1258, %v1213, %v656
      %v1279 = vsel %vm1258, %v1214, %v658
      %v1280 = vsel %vm1258, %v1215, %v660
      %v1281 = vsel %vm1258, %v1216, %v662
      %v1282 = vsel %vm1258, %v1217, %v664
      %v1283 = vsel %vm1258, %v1218, %v666
      %v1284 = vsel %vm1258, %v1219, %v668
      %v1285 = vsel %vm1258, %v1220, %v670
      %v1286 = vsel %vm1258, %v1221, %v672
      %v1287 = vsel %vm1258, %v1222, %v674
      %v1288 = vsel %vm1258, %v1223, %v676
      %v1289 = vsel %vm1258, %v1224, %v678
      %v1290 = vsel %vm1258, %v1225, %v680
      %v1291 = vsel %vm1258, %v1226, %v682
      %v1292 = vsel %vm1258, %v1227, %v684
      %v1293 = vsel %vm1258, %v1228, %v686
      %v1294 = vsel %vm1258, %v1229, %v688
      %v1295 = vsel %vm1258, %v1230, %v690
      %v1296 = vsel %vm1258, %v1231, %v692
      %v1297 = vsel %vm1258, %v1232, %v694
      %v1298 = vsel %vm1258, %v1233, %v696
      %v1299 = vsel %vm1258, %v1234, %v698
      %v1300 = vsel %vm1258, %v1235, %v700
      %v1301 = vsel %vm1258, %v1236, %v702
      %v1302 = vsel %vm1258, %v1237, %v704
      %v1303 = vsel %vm1258, %v1238, %v706
      %v1304 = vsel %vm1258, %v1239, %v708
      %v1305 = vsel %vm1258, %v1240, %v710
      %v1306 = vsel %vm1258, %v1241, %v712
      %v1307 = vsel %vm1258, %v1242, %v714
      %v1308 = vsel %vm1258, %v1243, %v716
      %v1309 = vsel %vm1258, %v1244, %v718
      %v1310 = vsel %vm1258, %v1245, %v720
      %v1311 = vsel %vm1258, %v1246, %v722
      %v1312 = vsel %vm1258, %v1247, %v724
      %v1313 = vsel %vm1258, %v1248, %v726
      %v1314 = vsel %vm1258, %v1249, %v728
      %v1315 = vsel %vm1258, %v1250, %v730
      %v1316 = vsel %vm1258, %v1251, %v732
      %v1317 = vsel %vm1258, %v1252, %v734
      %v1318 = vsel %vm1258, %v1253, %v736
      %v1319 = vsel %vm1258, %v1254, %v738
      %v1320 = vsel %vm1258, %v1255, %v740
      %v1321 = vsel %vm1258, %v1256, %v742
      %v1322 = vsel %vm1258, %v1257, %v744
      %vm1323 = vcmask 211968
      %v1324 = vsel %vm1323, %v1259, %v810
      %v1325 = vsel %vm1323, %v1260, %v812
      %v1326 = vsel %vm1323, %v1261, %v814
      %v1327 = vsel %vm1323, %v1262, %v816
      %v1328 = vsel %vm1323, %v1263, %v818
      %v1329 = vsel %vm1323, %v1264, %v820
      %v1330 = vsel %vm1323, %v1265, %v822
      %v1331 = vsel %vm1323, %v1266, %v824
      %v1332 = vsel %vm1323, %v1267, %v826
      %v1333 = vsel %vm1323, %v1268, %v828
      %v1334 = vsel %vm1323, %v1269, %v830
      %v1335 = vsel %vm1323, %v1270, %v832
      %v1336 = vsel %vm1323, %v1271, %v834
      %v1337 = vsel %vm1323, %v1272, %v836
      %v1338 = vsel %vm1323, %v1273, %v838
      %v1339 = vsel %vm1323, %v1274, %v840
      %v1340 = vsel %vm1323, %v1275, %v842
      %v1341 = vsel %vm1323, %v1276, %v844
      %v1342 = vsel %vm1323, %v1277, %v846
      %v1343 = vsel %vm1323, %v1278, %v848
      %v1344 = vsel %vm1323, %v1279, %v850
      %v1345 = vsel %vm1323, %v1280, %v852
      %v1346 = vsel %vm1323, %v1281, %v854
      %v1347 = vsel %vm1323, %v1282, %v856
      %v1348 = vsel %vm1323, %v1283, %v858
      %v1349 = vsel %vm1323, %v1284, %v860
      %v1350 = vsel %vm1323, %v1285, %v862
      %v1351 = vsel %vm1323, %v1286, %v864
      %v1352 = vsel %vm1323, %v1287, %v866
      %v1353 = vsel %vm1323, %v1288, %v868
      %v1354 = vsel %vm1323, %v1289, %v870
      %v1355 = vsel %vm1323, %v1290, %v872
      %v1356 = vsel %vm1323, %v1291, %v874
      %v1357 = vsel %vm1323, %v1292, %v876
      %v1358 = vsel %vm1323, %v1293, %v878
      %v1359 = vsel %vm1323, %v1294, %v880
      %v1360 = vsel %vm1323, %v1295, %v882
      %v1361 = vsel %vm1323, %v1296, %v884
      %v1362 = vsel %vm1323, %v1297, %v886
      %v1363 = vsel %vm1323, %v1298, %v888
      %v1364 = vsel %vm1323, %v1299, %v890
      %v1365 = vsel %vm1323, %v1300, %v892
      %v1366 = vsel %vm1323, %v1301, %v894
      %v1367 = vsel %vm1323, %v1302, %v896
      %v1368 = vsel %vm1323, %v1303, %v898
      %v1369 = vsel %vm1323, %v1304, %v900
      %v1370 = vsel %vm1323, %v1305, %v902
      %v1371 = vsel %vm1323, %v1306, %v904
      %v1372 = vsel %vm1323, %v1307, %v906
      %v1373 = vsel %vm1323, %v1308, %v908
      %v1374 = vsel %vm1323, %v1309, %v910
      %v1375 = vsel %vm1323, %v1310, %v912
      %v1376 = vsel %vm1323, %v1311, %v914
      %v1377 = vsel %vm1323, %v1312, %v916
      %v1378 = vsel %vm1323, %v1313, %v918
      %v1379 = vsel %vm1323, %v1314, %v920
      %v1380 = vsel %vm1323, %v1315, %v922
      %v1381 = vsel %vm1323, %v1316, %v924
      %v1382 = vsel %vm1323, %v1317, %v926
      %v1383 = vsel %vm1323, %v1318, %v928
      %v1384 = vsel %vm1323, %v1319, %v930
      %v1385 = vsel %vm1323, %v1320, %v932
      %v1386 = vsel %vm1323, %v1321, %v934
      %v1387 = vsel %vm1323, %v1322, %v936
      %vm1388 = vcmask 375808
      %v1389 = vsel %vm1388, %v1324, %v1002
      %v1390 = vsel %vm1388, %v1325, %v1004
      %v1391 = vsel %vm1388, %v1326, %v1006
      %v1392 = vsel %vm1388, %v1327, %v1008
      %v1393 = vsel %vm1388, %v1328, %v1010
      %v1394 = vsel %vm1388, %v1329, %v1012
      %v1395 = vsel %vm1388, %v1330, %v1014
      %v1396 = vsel %vm1388, %v1331, %v1016
      %v1397 = vsel %vm1388, %v1332, %v1018
      %v1398 = vsel %vm1388, %v1333, %v1020
      %v1399 = vsel %vm1388, %v1334, %v1022
      %v1400 = vsel %vm1388, %v1335, %v1024
      %v1401 = vsel %vm1388, %v1336, %v1026
      %v1402 = vsel %vm1388, %v1337, %v1028
      %v1403 = vsel %vm1388, %v1338, %v1030
      %v1404 = vsel %vm1388, %v1339, %v1032
      %v1405 = vsel %vm1388, %v1340, %v1034
      %v1406 = vsel %vm1388, %v1341, %v1036
      %v1407 = vsel %vm1388, %v1342, %v1038
      %v1408 = vsel %vm1388, %v1343, %v1040
      %v1409 = vsel %vm1388, %v1344, %v1042
      %v1410 = vsel %vm1388, %v1345, %v1044
      %v1411 = vsel %vm1388, %v1346, %v1046
      %v1412 = vsel %vm1388, %v1347, %v1048
      %v1413 = vsel %vm1388, %v1348, %v1050
      %v1414 = vsel %vm1388, %v1349, %v1052
      %v1415 = vsel %vm1388, %v1350, %v1054
      %v1416 = vsel %vm1388, %v1351, %v1056
      %v1417 = vsel %vm1388, %v1352, %v1058
      %v1418 = vsel %vm1388, %v1353, %v1060
      %v1419 = vsel %vm1388, %v1354, %v1062
      %v1420 = vsel %vm1388, %v1355, %v1064
      %v1421 = vsel %vm1388, %v1356, %v1066
      %v1422 = vsel %vm1388, %v1357, %v1068
      %v1423 = vsel %vm1388, %v1358, %v1070
      %v1424 = vsel %vm1388, %v1359, %v1072
      %v1425 = vsel %vm1388, %v1360, %v1074
      %v1426 = vsel %vm1388, %v1361, %v1076
      %v1427 = vsel %vm1388, %v1362, %v1078
      %v1428 = vsel %vm1388, %v1363, %v1080
      %v1429 = vsel %vm1388, %v1364, %v1082
      %v1430 = vsel %vm1388, %v1365, %v1084
      %v1431 = vsel %vm1388, %v1366, %v1086
      %v1432 = vsel %vm1388, %v1367, %v1088
      %v1433 = vsel %vm1388, %v1368, %v1090
      %v1434 = vsel %vm1388, %v1369, %v1092
      %v1435 = vsel %vm1388, %v1370, %v1094
      %v1436 = vsel %vm1388, %v1371, %v1096
      %v1437 = vsel %vm1388, %v1372, %v1098
      %v1438 = vsel %vm1388, %v1373, %v1100
      %v1439 = vsel %vm1388, %v1374, %v1102
      %v1440 = vsel %vm1388, %v1375, %v1104
      %v1441 = vsel %vm1388, %v1376, %v1106
      %v1442 = vsel %vm1388, %v1377, %v1108
      %v1443 = vsel %vm1388, %v1378, %v1110
      %v1444 = vsel %vm1388, %v1379, %v1112
      %v1445 = vsel %vm1388, %v1380, %v1114
      %v1446 = vsel %vm1388, %v1381, %v1116
      %v1447 = vsel %vm1388, %v1382, %v1118
      %v1448 = vsel %vm1388, %v1383, %v1120
      %v1449 = vsel %vm1388, %v1384, %v1122
      %v1450 = vsel %vm1388, %v1385, %v1124
      %v1451 = vsel %vm1388, %v1386, %v1126
      %v1452 = vsel %vm1388, %v1387, %v1128
      %vm1453 = vcmask 457728
      %1454 = vst.msk [vmem:[%s167] sm:$0xff] %vm1453, %v1389
      %1455 = vst.msk [vmem:[%s167 + $0x8] sm:$0xff] %vm1453, %v1390
      %1456 = vst.msk [vmem:[%s167 + $0x10] sm:$0xff] %vm1453, %v1391
      %1457 = vst.msk [vmem:[%s167 + $0x18] sm:$0xff] %vm1453, %v1392
      %1458 = vst.msk [vmem:[%s167 + $0x20] sm:$0xff] %vm1453, %v1393
      %1459 = vst.msk [vmem:[%s167 + $0x28] sm:$0xff] %vm1453, %v1394
      %1460 = vst.msk [vmem:[%s167 + $0x30] sm:$0xff] %vm1453, %v1395
      %1461 = vst.msk [vmem:[%s167 + $0x38] sm:$0xff] %vm1453, %v1396
      %1462 = vst.msk [vmem:[%s167 + $0x40] sm:$0xff] %vm1453, %v1397
      %1463 = vst.msk [vmem:[%s167 + $0x48] sm:$0xff] %vm1453, %v1398
      %1464 = vst.msk [vmem:[%s167 + $0x50] sm:$0xff] %vm1453, %v1399
      %1465 = vst.msk [vmem:[%s167 + $0x58] sm:$0xff] %vm1453, %v1400
      %1466 = vst.msk [vmem:[%s167 + $0x60] sm:$0xff] %vm1453, %v1401
      %1467 = vst.msk [vmem:[%s167 + $0x68] sm:$0xff] %vm1453, %v1402
      %1468 = vst.msk [vmem:[%s167 + $0x70] sm:$0xff] %vm1453, %v1403
      %1469 = vst.msk [vmem:[%s167 + $0x78] sm:$0xff] %vm1453, %v1404
      %1470 = vst.msk [vmem:[%s167 + $0x80] sm:$0xff] %vm1453, %v1405
      %1471 = vst.msk [vmem:[%s167 + $0x88] sm:$0xff] %vm1453, %v1406
      %1472 = vst.msk [vmem:[%s167 + $0x90] sm:$0xff] %vm1453, %v1407
      %1473 = vst.msk [vmem:[%s167 + $0x98] sm:$0xff] %vm1453, %v1408
      %1474 = vst.msk [vmem:[%s167 + $0xa0] sm:$0xff] %vm1453, %v1409
      %1475 = vst.msk [vmem:[%s167 + $0xa8] sm:$0xff] %vm1453, %v1410
      %1476 = vst.msk [vmem:[%s167 + $0xb0] sm:$0xff] %vm1453, %v1411
      %1477 = vst.msk [vmem:[%s167 + $0xb8] sm:$0xff] %vm1453, %v1412
      %1478 = vst.msk [vmem:[%s167 + $0xc0] sm:$0xff] %vm1453, %v1413
      %1479 = vst.msk [vmem:[%s167 + $0xc8] sm:$0xff] %vm1453, %v1414
      %1480 = vst.msk [vmem:[%s167 + $0xd0] sm:$0xff] %vm1453, %v1415
      %1481 = vst.msk [vmem:[%s167 + $0xd8] sm:$0xff] %vm1453, %v1416
      %1482 = vst.msk [vmem:[%s167 + $0xe0] sm:$0xff] %vm1453, %v1417
      %1483 = vst.msk [vmem:[%s167 + $0xe8] sm:$0xff] %vm1453, %v1418
      %1484 = vst.msk [vmem:[%s167 + $0xf0] sm:$0xff] %vm1453, %v1419
      %1485 = vst.msk [vmem:[%s167 + $0xf8] sm:$0xff] %vm1453, %v1420
      %1486 = vst.msk [vmem:[%s167 + $0x100] sm:$0xff] %vm1453, %v1421
      %1487 = vst.msk [vmem:[%s167 + $0x108] sm:$0xff] %vm1453, %v1422
      %1488 = vst.msk [vmem:[%s167 + $0x110] sm:$0xff] %vm1453, %v1423
      %1489 = vst.msk [vmem:[%s167 + $0x118] sm:$0xff] %vm1453, %v1424
      %1490 = vst.msk [vmem:[%s167 + $0x120] sm:$0xff] %vm1453, %v1425
      %1491 = vst.msk [vmem:[%s167 + $0x128] sm:$0xff] %vm1453, %v1426
      %1492 = vst.msk [vmem:[%s167 + $0x130] sm:$0xff] %vm1453, %v1427
      %1493 = vst.msk [vmem:[%s167 + $0x138] sm:$0xff] %vm1453, %v1428
      %1494 = vst.msk [vmem:[%s167 + $0x140] sm:$0xff] %vm1453, %v1429
      %1495 = vst.msk [vmem:[%s167 + $0x148] sm:$0xff] %vm1453, %v1430
      %1496 = vst.msk [vmem:[%s167 + $0x150] sm:$0xff] %vm1453, %v1431
      %1497 = vst.msk [vmem:[%s167 + $0x158] sm:$0xff] %vm1453, %v1432
      %1498 = vst.msk [vmem:[%s167 + $0x160] sm:$0xff] %vm1453, %v1433
      %1499 = vst.msk [vmem:[%s167 + $0x168] sm:$0xff] %vm1453, %v1434
      %1500 = vst.msk [vmem:[%s167 + $0x170] sm:$0xff] %vm1453, %v1435
      %1501 = vst.msk [vmem:[%s167 + $0x178] sm:$0xff] %vm1453, %v1436
      %1502 = vst.msk [vmem:[%s167 + $0x180] sm:$0xff] %vm1453, %v1437
      %1503 = vst.msk [vmem:[%s167 + $0x188] sm:$0xff] %vm1453, %v1438
      %1504 = vst.msk [vmem:[%s167 + $0x190] sm:$0xff] %vm1453, %v1439
      %1505 = vst.msk [vmem:[%s167 + $0x198] sm:$0xff] %vm1453, %v1440
      %1506 = vst.msk [vmem:[%s167 + $0x1a0] sm:$0xff] %vm1453, %v1441
      %1507 = vst.msk [vmem:[%s167 + $0x1a8] sm:$0xff] %vm1453, %v1442
      %1508 = vst.msk [vmem:[%s167 + $0x1b0] sm:$0xff] %vm1453, %v1443
      %1509 = vst.msk [vmem:[%s167 + $0x1b8] sm:$0xff] %vm1453, %v1444
      %1510 = vst.msk [vmem:[%s167 + $0x1c0] sm:$0xff] %vm1453, %v1445
      %1511 = vst.msk [vmem:[%s167 + $0x1c8] sm:$0xff] %vm1453, %v1446
      %1512 = vst.msk [vmem:[%s167 + $0x1d0] sm:$0xff] %vm1453, %v1447
      %1513 = vst.msk [vmem:[%s167 + $0x1d8] sm:$0xff] %vm1453, %v1448
      %1514 = vst.msk [vmem:[%s167 + $0x1e0] sm:$0xff] %vm1453, %v1449
      %1515 = vst.msk [vmem:[%s167 + $0x1e8] sm:$0xff] %vm1453, %v1450
      %1516 = vst.msk [vmem:[%s167 + $0x1f0] sm:$0xff] %vm1453, %v1451
      %1517 = vst.msk [vmem:[%s167 + $0x1f8] sm:$0xff] %vm1453, %v1452
      %s1518 = smul.u32 64, %s13
      %p1519 = scmp.lt.s32.totalorder %s1518, 127
      %s1520 = scalar_select %p1519, %s1518, 127
      %s1521 = smul.addr %s1520, 8
      %s1522 = scalar_lea.vmem %s2, %s1521
      // Predicated region
      $region29: #{tpu_custom_call.1} parent=27 // pred_check
        %p1523 = pneg %p83
      $region30: #{tpu_custom_call.1} parent=27 // pred_check_branch
        %1525 = sbr.rel (%p1523) target = $region32
      $region31: #{tpu_custom_call.1} parent=27 // pred_region
        %s1526 = smul.u32 64, %s13
      $region32: #{tpu_custom_call.1} parent=27 // pred_fallthru
        _
    $region28: #{tpu_custom_call.1} parent=5 // pred_fallthru
      _
    %p1527 = scmp.le.s32.totalorder 2, %s8
    // Predicated region
    $region33: #{tpu_custom_call.1} parent=5 // pred_check
      %p1528 = pneg %p1527
    $region34: #{tpu_custom_call.1} parent=5 // pred_check_branch
      %1530 = sbr.rel (%p1528) target = $region36
    $region35: #{tpu_custom_call.1} parent=5 // pred_region
      %s1531 = ssub.s32 %s8, 2
      // Predicated region
      $region37: #{tpu_custom_call.1} parent=35 // pred_check
        %p1532 = pneg %p89
      $region38: #{tpu_custom_call.1} parent=35 // pred_check_branch
        %1534 = sbr.rel (%p1532) target = $region40
      $region39: #{tpu_custom_call.1} parent=35 // pred_region
        %s1535 = smul.u32 64, %s14
        %p1536 = scmp.lt.s32.totalorder %s1535, 127
        %s1537 = scalar_select %p1536, %s1535, 127
        %s1538 = smul.addr %s1537, 8
        %s1539 = scalar_lea.vmem %s2, %s1538
      $region40: #{tpu_custom_call.1} parent=35 // pred_fallthru
        _
    $region36: #{tpu_custom_call.1} parent=5 // pred_fallthru
      _
  $region6: #{tpu_custom_call.1} parent=0 // loop_footer
    %s12 = sadd.s32 1, %s8
  $region7: #{tpu_custom_call.1} parent=0 // loop_footer_branch
    %7 = sbr.rel target = $region3
  $region8: #{tpu_custom_call.1} parent=0 // loop_exit
    _

</llo_original>
